<compile_context>
chip_gen: v7x
topology: tpu7x:2x2x1
jax: 0.10.0
libtpu: 0.0.40
codegen_flags: <defaults>
</compile_context>

<pallas_src>
import functools

import jax
import jax.numpy as jnp
from jax.experimental import pallas as pl
from jax.experimental.pallas import tpu as pltpu


def _seg_head_kernel(x_ref, w1_ref, b1_ref, w2_ref, b2_ref, o_ref, *,
                     height, width):
    """Fused 3x3 conv + bias + ReLU + 1x1 conv + bias for one image.

    x_ref : (1, C, H*W)    input image, channel-major, flattened spatial (f32)
    w1_ref: (9, hid, C)    3x3 conv weights, tap-major (bf16, resident)
    b1_ref: (hid, 1)       f32
    w2_ref: (cout, hid)    1x1 conv weights (bf16, resident)
    b2_ref: (cout, 1)      f32
    o_ref : (1, cout, H*W) f32 logits (lane-dense minor dim = H*W)
    """
    c_in = x_ref.shape[1]
    hw = height * width
    pad = width + 1                      # widest tap offset is +/- (width + 1)

    x = x_ref[0]                                            # (C, HW) f32
    zeros = jnp.zeros((c_in, pad), x.dtype)
    # SAME zero padding built in VMEM (no HBM pad pass): xw[:, pad + q] == x[:, q]
    xw = jnp.concatenate([zeros, x, zeros], axis=1)         # (C, HW + 2*pad)

    # Column index of every flattened pixel (masks horizontal row-wraps).
    col = jax.lax.broadcasted_iota(jnp.int32, (c_in, hw), 1) % width

    h = None
    for di in range(3):
        for dj in range(3):
            oy, ox = di - 1, dj - 1
            shift = oy * width + ox
            # tap[:, p] == x[:, p + shift] for in-image sources, else 0.
            tap = xw[:, pad + shift:pad + shift + hw]       # (C, HW)
            if ox != 0:  # zero pixels whose source wrapped across a row edge
                valid = (col + ox >= 0) & (col + ox < width)
                tap = jnp.where(valid, tap, 0.0)
            contrib = jnp.dot(w1_ref[di * 3 + dj],          # (hid, C) bf16
                              tap.astype(w1_ref.dtype),     # (C, HW) bf16
                              preferred_element_type=jnp.float32)
            h = contrib if h is None else h + contrib       # (hid, HW) f32
    h = jnp.maximum(h + b1_ref[...], 0.0)                   # f32 epilogue (v5e-safe)
    out = jnp.dot(w2_ref[...], h.astype(w2_ref.dtype),
                  preferred_element_type=jnp.float32) + b2_ref[...]
    o_ref[0] = out.astype(o_ref.dtype)                      # (cout, HW) lane-dense


def _fused_seg_forward(x_flat, w1, b1, w2, b2, *, height, width):
    n, c_in, hw = x_flat.shape
    hid = w1.shape[1]
    cout = w2.shape[0]

    kernel = functools.partial(_seg_head_kernel, height=height, width=width)
    flops = 2 * n * hw * (9 * c_in * hid + hid * cout)
    bytes_accessed = (x_flat.size * x_flat.dtype.itemsize
                      + n * cout * hw * 4
                      + w1.size * w1.dtype.itemsize
                      + w2.size * w2.dtype.itemsize
                      + b1.size * 4 + b2.size * 4)

    return pl.pallas_call(
        kernel,
        out_shape=jax.ShapeDtypeStruct((n, cout, hw), jnp.float32),
        grid_spec=pltpu.PrefetchScalarGridSpec(
            num_scalar_prefetch=0,
            grid=(n,),
            in_specs=[
                pl.BlockSpec((1, c_in, hw), lambda i: (i, 0, 0)),
                # Constant index maps: weights/biases are DMA'd once and stay
                # resident in VMEM across grid steps (no re-issue).
                pl.BlockSpec((9, hid, c_in), lambda i: (0, 0, 0)),
                pl.BlockSpec((hid, 1), lambda i: (0, 0)),
                pl.BlockSpec((cout, hid), lambda i: (0, 0)),
                pl.BlockSpec((cout, 1), lambda i: (0, 0)),
            ],
            out_specs=pl.BlockSpec((1, cout, hw), lambda i: (i, 0, 0)),
        ),
        compiler_params=pltpu.CompilerParams(
            dimension_semantics=("parallel",)),   # v7x: 2 TCs split the batch
        cost_estimate=pl.CostEstimate(
            flops=flops, transcendentals=0, bytes_accessed=bytes_accessed),
    )(x_flat, w1, b1, w2, b2)


def init_params(key, c_in=4, hidden=8, num_classes=3):
    k1, k2, k3, k4 = jax.random.split(key, 4)
    # PyTorch conv weight layout: (C_out, C_in, KH, KW).
    w1_pt = jax.random.normal(k1, (hidden, c_in, 3, 3), jnp.float32) * 0.1
    b1 = jax.random.normal(k2, (hidden,), jnp.float32) * 0.05
    w2_pt = jax.random.normal(k3, (num_classes, hidden, 1, 1), jnp.float32) * 0.1
    b2 = jax.random.normal(k4, (num_classes,), jnp.float32) * 0.05
    # Round conv weights to bf16 once (the kernel's MXU operands are bf16 with
    # f32 accumulation); the f32 reference uses the same rounded weights.
    w1_bf = w1_pt.astype(jnp.bfloat16)
    w2_bf = w2_pt.astype(jnp.bfloat16)
    # Kernel layouts: w1 tap-major (9, hid, C); w2 (cout, hid); biases (rows, 1).
    w1 = jnp.transpose(w1_bf, (2, 3, 0, 1)).reshape(9, hidden, c_in)
    w2 = w2_bf.reshape(num_classes, hidden)
    return {
        "w1": w1, "b1": b1.reshape(hidden, 1),
        "w2": w2, "b2": b2.reshape(num_classes, 1),
        # f32 copies of the bf16-rounded weights, for the pure-JAX reference.
        "w1_pt": w1_bf.astype(jnp.float32), "w2_pt": w2_bf.astype(jnp.float32),
    }


@jax.jit
def segmentation_model_output_wrapper(x_nchw, w1, b1, w2, b2):
    """Equivalent of SegmentationModelOutputWrapper(model)(x): model(x)['out']."""
    n, c, h, w = x_nchw.shape
    x_flat = x_nchw.reshape(n, c, h * w)                  # free, contiguous
    out_flat = _fused_seg_forward(x_flat, w1, b1, w2, b2, height=h, width=w)
    return out_flat.reshape(n, -1, h, w)                  # NCHW, like torch 'out'


def _reference(x_nchw, params):
    dn = ("NCHW", "OIHW", "NCHW")
    y = jax.lax.conv_general_dilated(
        x_nchw, params["w1_pt"], (1, 1), "SAME", dimension_numbers=dn,
        precision=jax.lax.Precision.HIGHEST)
    y = jnp.maximum(y + params["b1"].reshape(1, -1, 1, 1), 0.0)
    z = jax.lax.conv_general_dilated(
        y, params["w2_pt"], (1, 1), "SAME", dimension_numbers=dn,
        precision=jax.lax.Precision.HIGHEST)
    return z + params["b2"].reshape(1, -1, 1, 1)


if __name__ == "__main__":
    key = jax.random.PRNGKey(0)
    kx, kp = jax.random.split(key)

    N, C, H, W = 2, 4, 16, 16
    x = jax.random.normal(kx, (N, C, H, W), jnp.float32)
    params = init_params(kp, c_in=C, hidden=8, num_classes=3)

    out = segmentation_model_output_wrapper(
        x, params["w1"], params["b1"], params["w2"], params["b2"])
    out = jax.block_until_ready(out)

    ref = jax.block_until_ready(_reference(x, params))
    assert out.shape == (N, 3, H, W), out.shape
    err = float(jnp.max(jnp.abs(out - ref)))
    # bf16 MXU operands (f32 accumulation) vs. the f32 reference.
    assert err < 2e-2, err

    print("KERNEL_OK")
</pallas_src>

<mosaic_0001>
module attributes {stable_mosaic.version = 11 : i64} {
  func.func @_seg_head_kernel(%arg0: i32, %arg1: memref<1x4x256xf32, #tpu.memory_space<vmem>>, %arg2: memref<9x8x4xbf16, #tpu.memory_space<vmem>>, %arg3: memref<8x1xf32, #tpu.memory_space<vmem>>, %arg4: memref<3x8xbf16, #tpu.memory_space<vmem>>, %arg5: memref<3x1xf32, #tpu.memory_space<vmem>>, %arg6: memref<1x3x256xf32, #tpu.memory_space<vmem>>) attributes {dimension_semantics = [#tpu.dimension_semantics<parallel>], iteration_bounds = array<i64: 2>, scalar_prefetch = 0 : i64, scratch_operands = 0 : i64, tpu.core_type = #tpu.core_type<tc>, window_params = [{transform_indices = @transform_0, window_bounds = array<i64: 1, 4, 256>}, {pipeline_mode = #tpu.pipeline_mode<synchronous>, transform_indices = @transform_1, window_bounds = array<i64: 9, 8, 4>}, {pipeline_mode = #tpu.pipeline_mode<synchronous>, transform_indices = @transform_2, window_bounds = array<i64: 8, 1>}, {pipeline_mode = #tpu.pipeline_mode<synchronous>, transform_indices = @transform_3, window_bounds = array<i64: 3, 8>}, {pipeline_mode = #tpu.pipeline_mode<synchronous>, transform_indices = @transform_4, window_bounds = array<i64: 3, 1>}, {transform_indices = @transform_5, window_bounds = array<i64: 1, 3, 256>}]} {
    %c0 = arith.constant 0 : index
    %c0_0 = arith.constant 0 : index
    %c0_1 = arith.constant 0 : index
    %0 = vector.load %arg1[%c0, %c0_0, %c0_1] : memref<1x4x256xf32, #tpu.memory_space<vmem>>, vector<1x4x256xf32>
    %1 = vector.shape_cast %0 : vector<1x4x256xf32> to vector<4x256xf32>
    %cst = arith.constant 0.000000e+00 : f32
    %2 = vector.broadcast %cst : f32 to vector<4x17xf32>
    %3 = tpu.concatenate %2, %1, %2 in 1 : vector<4x17xf32>, vector<4x256xf32>, vector<4x17xf32> -> vector<4x290xf32>
    %4 = tpu.iota {dimensions = array<i32: 1>} : vector<4x256xi32>
    %c16_i32 = arith.constant 16 : i32
    %c0_i32 = arith.constant 0 : i32
    %5 = arith.cmpi eq, %c16_i32, %c0_i32 : i32
    %c1_i32 = arith.constant 1 : i32
    %6 = arith.select %5, %c1_i32, %c16_i32 : i32
    %7 = vector.broadcast %6 : i32 to vector<4x256xi32>
    %8 = arith.remsi %4, %7 : vector<4x256xi32>
    %c0_i32_2 = arith.constant 0 : i32
    %9 = vector.broadcast %c0_i32_2 : i32 to vector<4x256xi32>
    %10 = arith.cmpi ne, %8, %9 : vector<4x256xi32>
    %c0_i32_3 = arith.constant 0 : i32
    %11 = vector.broadcast %c0_i32_3 : i32 to vector<4x256xi32>
    %12 = arith.cmpi slt, %8, %11 : vector<4x256xi32>
    %c0_i32_4 = arith.constant 0 : i32
    %13 = arith.cmpi slt, %6, %c0_i32_4 : i32
    %14 = vector.broadcast %13 : i1 to vector<4x256xi1>
    %15 = vector.broadcast %14 : vector<4x256xi1> to vector<4x256xi1>
    %16 = arith.xori %12, %15 : vector<4x256xi1>
    %17 = arith.andi %16, %10 : vector<4x256xi1>
    %18 = vector.broadcast %6 : i32 to vector<4x256xi32>
    %19 = arith.addi %8, %18 : vector<4x256xi32>
    %20 = arith.select %17, %19, %8 : vector<4x256xi1>, vector<4x256xi32>
    %21 = vector.extract_strided_slice %3 {offsets = [0, 0], sizes = [4, 256], strides = [1, 1]} : vector<4x290xf32> to vector<4x256xf32>
    %c-1_i32 = arith.constant -1 : i32
    %22 = vector.broadcast %c-1_i32 : i32 to vector<4x256xi32>
    %23 = arith.addi %20, %22 : vector<4x256xi32>
    %c0_i32_5 = arith.constant 0 : i32
    %24 = vector.broadcast %c0_i32_5 : i32 to vector<4x256xi32>
    %25 = arith.cmpi sge, %23, %24 : vector<4x256xi32>
    %c-1_i32_6 = arith.constant -1 : i32
    %26 = vector.broadcast %c-1_i32_6 : i32 to vector<4x256xi32>
    %27 = arith.addi %20, %26 : vector<4x256xi32>
    %c16_i32_7 = arith.constant 16 : i32
    %28 = vector.broadcast %c16_i32_7 : i32 to vector<4x256xi32>
    %29 = arith.cmpi slt, %27, %28 : vector<4x256xi32>
    %30 = arith.andi %25, %29 : vector<4x256xi1>
    %cst_8 = arith.constant 0.000000e+00 : f32
    %31 = vector.broadcast %cst_8 : f32 to vector<4x256xf32>
    %32 = arith.select %30, %21, %31 : vector<4x256xi1>, vector<4x256xf32>
    %c0_9 = arith.constant 0 : index
    %c0_10 = arith.constant 0 : index
    %c0_11 = arith.constant 0 : index
    %33 = vector.load %arg2[%c0_9, %c0_10, %c0_11] : memref<9x8x4xbf16, #tpu.memory_space<vmem>>, vector<1x8x4xbf16>
    %34 = vector.shape_cast %33 : vector<1x8x4xbf16> to vector<8x4xbf16>
    %35 = arith.truncf %32 : vector<4x256xf32> to vector<4x256xbf16>
    %cst_12 = arith.constant dense<0.000000e+00> : vector<8x256xf32>
    %36 = tpu.matmul %34, %35, %cst_12 {dimension_numbers = #tpu.dot_dimension_numbers<[1], [0], [0], [1], [0, 0, 1, 1], [], []>} : vector<8x4xbf16>, vector<4x256xbf16>, vector<8x256xf32> -> vector<8x256xf32>
    %37 = vector.extract_strided_slice %3 {offsets = [0, 1], sizes = [4, 256], strides = [1, 1]} : vector<4x290xf32> to vector<4x256xf32>
    %c1 = arith.constant 1 : index
    %c0_13 = arith.constant 0 : index
    %c0_14 = arith.constant 0 : index
    %38 = vector.load %arg2[%c1, %c0_13, %c0_14] : memref<9x8x4xbf16, #tpu.memory_space<vmem>>, vector<1x8x4xbf16>
    %39 = vector.shape_cast %38 : vector<1x8x4xbf16> to vector<8x4xbf16>
    %40 = arith.truncf %37 : vector<4x256xf32> to vector<4x256xbf16>
    %cst_15 = arith.constant dense<0.000000e+00> : vector<8x256xf32>
    %41 = tpu.matmul %39, %40, %cst_15 {dimension_numbers = #tpu.dot_dimension_numbers<[1], [0], [0], [1], [0, 0, 1, 1], [], []>} : vector<8x4xbf16>, vector<4x256xbf16>, vector<8x256xf32> -> vector<8x256xf32>
    %42 = arith.addf %36, %41 : vector<8x256xf32>
    %43 = vector.extract_strided_slice %3 {offsets = [0, 2], sizes = [4, 256], strides = [1, 1]} : vector<4x290xf32> to vector<4x256xf32>
    %c1_i32_16 = arith.constant 1 : i32
    %44 = vector.broadcast %c1_i32_16 : i32 to vector<4x256xi32>
    %45 = arith.addi %20, %44 : vector<4x256xi32>
    %c0_i32_17 = arith.constant 0 : i32
    %46 = vector.broadcast %c0_i32_17 : i32 to vector<4x256xi32>
    %47 = arith.cmpi sge, %45, %46 : vector<4x256xi32>
    %c1_i32_18 = arith.constant 1 : i32
    %48 = vector.broadcast %c1_i32_18 : i32 to vector<4x256xi32>
    %49 = arith.addi %20, %48 : vector<4x256xi32>
    %c16_i32_19 = arith.constant 16 : i32
    %50 = vector.broadcast %c16_i32_19 : i32 to vector<4x256xi32>
    %51 = arith.cmpi slt, %49, %50 : vector<4x256xi32>
    %52 = arith.andi %47, %51 : vector<4x256xi1>
    %cst_20 = arith.constant 0.000000e+00 : f32
    %53 = vector.broadcast %cst_20 : f32 to vector<4x256xf32>
    %54 = arith.select %52, %43, %53 : vector<4x256xi1>, vector<4x256xf32>
    %c2 = arith.constant 2 : index
    %c0_21 = arith.constant 0 : index
    %c0_22 = arith.constant 0 : index
    %55 = vector.load %arg2[%c2, %c0_21, %c0_22] : memref<9x8x4xbf16, #tpu.memory_space<vmem>>, vector<1x8x4xbf16>
    %56 = vector.shape_cast %55 : vector<1x8x4xbf16> to vector<8x4xbf16>
    %57 = arith.truncf %54 : vector<4x256xf32> to vector<4x256xbf16>
    %cst_23 = arith.constant dense<0.000000e+00> : vector<8x256xf32>
    %58 = tpu.matmul %56, %57, %cst_23 {dimension_numbers = #tpu.dot_dimension_numbers<[1], [0], [0], [1], [0, 0, 1, 1], [], []>} : vector<8x4xbf16>, vector<4x256xbf16>, vector<8x256xf32> -> vector<8x256xf32>
    %59 = arith.addf %42, %58 : vector<8x256xf32>
    %60 = vector.extract_strided_slice %3 {offsets = [0, 16], sizes = [4, 256], strides = [1, 1]} : vector<4x290xf32> to vector<4x256xf32>
    %c-1_i32_24 = arith.constant -1 : i32
    %61 = vector.broadcast %c-1_i32_24 : i32 to vector<4x256xi32>
    %62 = arith.addi %20, %61 : vector<4x256xi32>
    %c0_i32_25 = arith.constant 0 : i32
    %63 = vector.broadcast %c0_i32_25 : i32 to vector<4x256xi32>
    %64 = arith.cmpi sge, %62, %63 : vector<4x256xi32>
    %c-1_i32_26 = arith.constant -1 : i32
    %65 = vector.broadcast %c-1_i32_26 : i32 to vector<4x256xi32>
    %66 = arith.addi %20, %65 : vector<4x256xi32>
    %c16_i32_27 = arith.constant 16 : i32
    %67 = vector.broadcast %c16_i32_27 : i32 to vector<4x256xi32>
    %68 = arith.cmpi slt, %66, %67 : vector<4x256xi32>
    %69 = arith.andi %64, %68 : vector<4x256xi1>
    %cst_28 = arith.constant 0.000000e+00 : f32
    %70 = vector.broadcast %cst_28 : f32 to vector<4x256xf32>
    %71 = arith.select %69, %60, %70 : vector<4x256xi1>, vector<4x256xf32>
    %c3 = arith.constant 3 : index
    %c0_29 = arith.constant 0 : index
    %c0_30 = arith.constant 0 : index
    %72 = vector.load %arg2[%c3, %c0_29, %c0_30] : memref<9x8x4xbf16, #tpu.memory_space<vmem>>, vector<1x8x4xbf16>
    %73 = vector.shape_cast %72 : vector<1x8x4xbf16> to vector<8x4xbf16>
    %74 = arith.truncf %71 : vector<4x256xf32> to vector<4x256xbf16>
    %cst_31 = arith.constant dense<0.000000e+00> : vector<8x256xf32>
    %75 = tpu.matmul %73, %74, %cst_31 {dimension_numbers = #tpu.dot_dimension_numbers<[1], [0], [0], [1], [0, 0, 1, 1], [], []>} : vector<8x4xbf16>, vector<4x256xbf16>, vector<8x256xf32> -> vector<8x256xf32>
    %76 = arith.addf %59, %75 : vector<8x256xf32>
    %77 = vector.extract_strided_slice %3 {offsets = [0, 17], sizes = [4, 256], strides = [1, 1]} : vector<4x290xf32> to vector<4x256xf32>
    %c4 = arith.constant 4 : index
    %c0_32 = arith.constant 0 : index
    %c0_33 = arith.constant 0 : index
    %78 = vector.load %arg2[%c4, %c0_32, %c0_33] : memref<9x8x4xbf16, #tpu.memory_space<vmem>>, vector<1x8x4xbf16>
    %79 = vector.shape_cast %78 : vector<1x8x4xbf16> to vector<8x4xbf16>
    %80 = arith.truncf %77 : vector<4x256xf32> to vector<4x256xbf16>
    %cst_34 = arith.constant dense<0.000000e+00> : vector<8x256xf32>
    %81 = tpu.matmul %79, %80, %cst_34 {dimension_numbers = #tpu.dot_dimension_numbers<[1], [0], [0], [1], [0, 0, 1, 1], [], []>} : vector<8x4xbf16>, vector<4x256xbf16>, vector<8x256xf32> -> vector<8x256xf32>
    %82 = arith.addf %76, %81 : vector<8x256xf32>
    %83 = vector.extract_strided_slice %3 {offsets = [0, 18], sizes = [4, 256], strides = [1, 1]} : vector<4x290xf32> to vector<4x256xf32>
    %c1_i32_35 = arith.constant 1 : i32
    %84 = vector.broadcast %c1_i32_35 : i32 to vector<4x256xi32>
    %85 = arith.addi %20, %84 : vector<4x256xi32>
    %c0_i32_36 = arith.constant 0 : i32
    %86 = vector.broadcast %c0_i32_36 : i32 to vector<4x256xi32>
    %87 = arith.cmpi sge, %85, %86 : vector<4x256xi32>
    %c1_i32_37 = arith.constant 1 : i32
    %88 = vector.broadcast %c1_i32_37 : i32 to vector<4x256xi32>
    %89 = arith.addi %20, %88 : vector<4x256xi32>
    %c16_i32_38 = arith.constant 16 : i32
    %90 = vector.broadcast %c16_i32_38 : i32 to vector<4x256xi32>
    %91 = arith.cmpi slt, %89, %90 : vector<4x256xi32>
    %92 = arith.andi %87, %91 : vector<4x256xi1>
    %cst_39 = arith.constant 0.000000e+00 : f32
    %93 = vector.broadcast %cst_39 : f32 to vector<4x256xf32>
    %94 = arith.select %92, %83, %93 : vector<4x256xi1>, vector<4x256xf32>
    %c5 = arith.constant 5 : index
    %c0_40 = arith.constant 0 : index
    %c0_41 = arith.constant 0 : index
    %95 = vector.load %arg2[%c5, %c0_40, %c0_41] : memref<9x8x4xbf16, #tpu.memory_space<vmem>>, vector<1x8x4xbf16>
    %96 = vector.shape_cast %95 : vector<1x8x4xbf16> to vector<8x4xbf16>
    %97 = arith.truncf %94 : vector<4x256xf32> to vector<4x256xbf16>
    %cst_42 = arith.constant dense<0.000000e+00> : vector<8x256xf32>
    %98 = tpu.matmul %96, %97, %cst_42 {dimension_numbers = #tpu.dot_dimension_numbers<[1], [0], [0], [1], [0, 0, 1, 1], [], []>} : vector<8x4xbf16>, vector<4x256xbf16>, vector<8x256xf32> -> vector<8x256xf32>
    %99 = arith.addf %82, %98 : vector<8x256xf32>
    %100 = vector.extract_strided_slice %3 {offsets = [0, 32], sizes = [4, 256], strides = [1, 1]} : vector<4x290xf32> to vector<4x256xf32>
    %c-1_i32_43 = arith.constant -1 : i32
    %101 = vector.broadcast %c-1_i32_43 : i32 to vector<4x256xi32>
    %102 = arith.addi %20, %101 : vector<4x256xi32>
    %c0_i32_44 = arith.constant 0 : i32
    %103 = vector.broadcast %c0_i32_44 : i32 to vector<4x256xi32>
    %104 = arith.cmpi sge, %102, %103 : vector<4x256xi32>
    %c-1_i32_45 = arith.constant -1 : i32
    %105 = vector.broadcast %c-1_i32_45 : i32 to vector<4x256xi32>
    %106 = arith.addi %20, %105 : vector<4x256xi32>
    %c16_i32_46 = arith.constant 16 : i32
    %107 = vector.broadcast %c16_i32_46 : i32 to vector<4x256xi32>
    %108 = arith.cmpi slt, %106, %107 : vector<4x256xi32>
    %109 = arith.andi %104, %108 : vector<4x256xi1>
    %cst_47 = arith.constant 0.000000e+00 : f32
    %110 = vector.broadcast %cst_47 : f32 to vector<4x256xf32>
    %111 = arith.select %109, %100, %110 : vector<4x256xi1>, vector<4x256xf32>
    %c6 = arith.constant 6 : index
    %c0_48 = arith.constant 0 : index
    %c0_49 = arith.constant 0 : index
    %112 = vector.load %arg2[%c6, %c0_48, %c0_49] : memref<9x8x4xbf16, #tpu.memory_space<vmem>>, vector<1x8x4xbf16>
    %113 = vector.shape_cast %112 : vector<1x8x4xbf16> to vector<8x4xbf16>
    %114 = arith.truncf %111 : vector<4x256xf32> to vector<4x256xbf16>
    %cst_50 = arith.constant dense<0.000000e+00> : vector<8x256xf32>
    %115 = tpu.matmul %113, %114, %cst_50 {dimension_numbers = #tpu.dot_dimension_numbers<[1], [0], [0], [1], [0, 0, 1, 1], [], []>} : vector<8x4xbf16>, vector<4x256xbf16>, vector<8x256xf32> -> vector<8x256xf32>
    %116 = arith.addf %99, %115 : vector<8x256xf32>
    %117 = vector.extract_strided_slice %3 {offsets = [0, 33], sizes = [4, 256], strides = [1, 1]} : vector<4x290xf32> to vector<4x256xf32>
    %c7 = arith.constant 7 : index
    %c0_51 = arith.constant 0 : index
    %c0_52 = arith.constant 0 : index
    %118 = vector.load %arg2[%c7, %c0_51, %c0_52] : memref<9x8x4xbf16, #tpu.memory_space<vmem>>, vector<1x8x4xbf16>
    %119 = vector.shape_cast %118 : vector<1x8x4xbf16> to vector<8x4xbf16>
    %120 = arith.truncf %117 : vector<4x256xf32> to vector<4x256xbf16>
    %cst_53 = arith.constant dense<0.000000e+00> : vector<8x256xf32>
    %121 = tpu.matmul %119, %120, %cst_53 {dimension_numbers = #tpu.dot_dimension_numbers<[1], [0], [0], [1], [0, 0, 1, 1], [], []>} : vector<8x4xbf16>, vector<4x256xbf16>, vector<8x256xf32> -> vector<8x256xf32>
    %122 = arith.addf %116, %121 : vector<8x256xf32>
    %123 = vector.extract_strided_slice %3 {offsets = [0, 34], sizes = [4, 256], strides = [1, 1]} : vector<4x290xf32> to vector<4x256xf32>
    %c1_i32_54 = arith.constant 1 : i32
    %124 = vector.broadcast %c1_i32_54 : i32 to vector<4x256xi32>
    %125 = arith.addi %20, %124 : vector<4x256xi32>
    %c0_i32_55 = arith.constant 0 : i32
    %126 = vector.broadcast %c0_i32_55 : i32 to vector<4x256xi32>
    %127 = arith.cmpi sge, %125, %126 : vector<4x256xi32>
    %c1_i32_56 = arith.constant 1 : i32
    %128 = vector.broadcast %c1_i32_56 : i32 to vector<4x256xi32>
    %129 = arith.addi %20, %128 : vector<4x256xi32>
    %c16_i32_57 = arith.constant 16 : i32
    %130 = vector.broadcast %c16_i32_57 : i32 to vector<4x256xi32>
    %131 = arith.cmpi slt, %129, %130 : vector<4x256xi32>
    %132 = arith.andi %127, %131 : vector<4x256xi1>
    %cst_58 = arith.constant 0.000000e+00 : f32
    %133 = vector.broadcast %cst_58 : f32 to vector<4x256xf32>
    %134 = arith.select %132, %123, %133 : vector<4x256xi1>, vector<4x256xf32>
    %c8 = arith.constant 8 : index
    %c0_59 = arith.constant 0 : index
    %c0_60 = arith.constant 0 : index
    %135 = vector.load %arg2[%c8, %c0_59, %c0_60] : memref<9x8x4xbf16, #tpu.memory_space<vmem>>, vector<1x8x4xbf16>
    %136 = vector.shape_cast %135 : vector<1x8x4xbf16> to vector<8x4xbf16>
    %137 = arith.truncf %134 : vector<4x256xf32> to vector<4x256xbf16>
    %cst_61 = arith.constant dense<0.000000e+00> : vector<8x256xf32>
    %138 = tpu.matmul %136, %137, %cst_61 {dimension_numbers = #tpu.dot_dimension_numbers<[1], [0], [0], [1], [0, 0, 1, 1], [], []>} : vector<8x4xbf16>, vector<4x256xbf16>, vector<8x256xf32> -> vector<8x256xf32>
    %139 = arith.addf %122, %138 : vector<8x256xf32>
    %c0_62 = arith.constant 0 : index
    %c0_63 = arith.constant 0 : index
    %140 = vector.load %arg3[%c0_62, %c0_63] : memref<8x1xf32, #tpu.memory_space<vmem>>, vector<8x1xf32>
    %141 = vector.broadcast %140 : vector<8x1xf32> to vector<8x256xf32>
    %142 = arith.addf %139, %141 : vector<8x256xf32>
    %cst_64 = arith.constant 0.000000e+00 : f32
    %143 = vector.broadcast %cst_64 : f32 to vector<8x256xf32>
    %144 = arith.maximumf %142, %143 : vector<8x256xf32>
    %c0_65 = arith.constant 0 : index
    %c0_66 = arith.constant 0 : index
    %145 = vector.load %arg4[%c0_65, %c0_66] : memref<3x8xbf16, #tpu.memory_space<vmem>>, vector<3x8xbf16>
    %146 = arith.truncf %144 : vector<8x256xf32> to vector<8x256xbf16>
    %cst_67 = arith.constant dense<0.000000e+00> : vector<3x256xf32>
    %147 = tpu.matmul %145, %146, %cst_67 {dimension_numbers = #tpu.dot_dimension_numbers<[1], [0], [0], [1], [0, 0, 1, 1], [], []>} : vector<3x8xbf16>, vector<8x256xbf16>, vector<3x256xf32> -> vector<3x256xf32>
    %c0_68 = arith.constant 0 : index
    %c0_69 = arith.constant 0 : index
    %148 = vector.load %arg5[%c0_68, %c0_69] : memref<3x1xf32, #tpu.memory_space<vmem>>, vector<3x1xf32>
    %149 = vector.broadcast %148 : vector<3x1xf32> to vector<3x256xf32>
    %150 = arith.addf %147, %149 : vector<3x256xf32>
    %c0_70 = arith.constant 0 : index
    %c0_71 = arith.constant 0 : index
    %c0_72 = arith.constant 0 : index
    %151 = vector.load %arg6[%c0_70, %c0_71, %c0_72] : memref<1x3x256xf32, #tpu.memory_space<vmem>>, vector<1x3x256xf32>
    %152 = vector.shape_cast %151 : vector<1x3x256xf32> to vector<3x256xf32>
    %153 = vector.shape_cast %150 : vector<3x256xf32> to vector<1x3x256xf32>
    tpu.vector_store %arg6[%c0_70, %c0_71, %c0_72], %153 {strides = array<i32>} : memref<1x3x256xf32, #tpu.memory_space<vmem>>, vector<1x3x256xf32>,
    return
  }
  func.func @transform_0(%arg0: i32) -> (i32, i32, i32) {
    %c0_i32 = arith.constant 0 : i32
    %c0_i32_0 = arith.constant 0 : i32
    %c0_i32_1 = arith.constant 0 : i32
    return %arg0, %c0_i32, %c0_i32_0 : i32, i32, i32
  }
  func.func @transform_1(%arg0: i32) -> (i32, i32, i32) {
    %c0_i32 = arith.constant 0 : i32
    %c0_i32_0 = arith.constant 0 : i32
    %c0_i32_1 = arith.constant 0 : i32
    %c0_i32_2 = arith.constant 0 : i32
    return %c0_i32, %c0_i32_0, %c0_i32_1 : i32, i32, i32
  }
  func.func @transform_2(%arg0: i32) -> (i32, i32) {
    %c0_i32 = arith.constant 0 : i32
    %c0_i32_0 = arith.constant 0 : i32
    %c0_i32_1 = arith.constant 0 : i32
    return %c0_i32, %c0_i32_0 : i32, i32
  }
  func.func @transform_3(%arg0: i32) -> (i32, i32) {
    %c0_i32 = arith.constant 0 : i32
    %c0_i32_0 = arith.constant 0 : i32
    %c0_i32_1 = arith.constant 0 : i32
    return %c0_i32, %c0_i32_0 : i32, i32
  }
  func.func @transform_4(%arg0: i32) -> (i32, i32) {
    %c0_i32 = arith.constant 0 : i32
    %c0_i32_0 = arith.constant 0 : i32
    %c0_i32_1 = arith.constant 0 : i32
    return %c0_i32, %c0_i32_0 : i32, i32
  }
  func.func @transform_5(%arg0: i32) -> (i32, i32, i32) {
    %c0_i32 = arith.constant 0 : i32
    %c0_i32_0 = arith.constant 0 : i32
    %c0_i32_1 = arith.constant 0 : i32
    return %arg0, %c0_i32, %c0_i32_0 : i32, i32, i32
  }
}

</mosaic_0001>

<llo_original>
// kernel: segmentation_model_output_wrapper.1
$region0: #{segmentation_model_output_wrapper.1}
  #allocation0 [shape = 'u32[]', space=smem, size = 0x4, offset = 0x4, fixed_abs, tag = 'smem constant byte address 0x4 - core index']
  #allocation1 [shape = 'u32[144,128]{1,0:T(1,128)}', space=vmem, size = 0x12000, scoped, tag = 'internal scratch']
  %s0 = inlined_call_operand.vmem [shape: f32[2,4,256], index: 0, kind: input, shape index: {}]
  %s1 = inlined_call_operand.vmem [shape: bf16[9,8,4], index: 1, kind: input, shape index: {}]
  %s2 = inlined_call_operand.vmem [shape: f32[8,1], index: 2, kind: input, shape index: {}]
  %s3 = inlined_call_operand.vmem [shape: bf16[3,8], index: 3, kind: input, shape index: {}]
  %s4 = inlined_call_operand.vmem [shape: f32[3,1], index: 4, kind: input, shape index: {}]
  %s5 = inlined_call_operand.vmem [shape: f32[2,3,256], index: 5, kind: output, shape index: {}]
  %s6 = sld [smem:[#allocation0]]
  $region53: #{segmentation_model_output_wrapper.1} parent=0
    _
  %s8 = ssub.s32 1, %s6
  %s9 = scalar_select 0, %s8, %s6
  loop: start=0, step=1, limit=4
  $region2: #{segmentation_model_output_wrapper.1} parent=0 // loop_pre_header
    _
  $region3: #{segmentation_model_output_wrapper.1} parent=0 // loop_header
    %s11 = sphi 0, %s15
    %p12 = scmp.ge.s32.totalorder %s11, 4
    %s21 = sphi 0, %s23
    %s24 = sphi 0, %s21
    %s25 = sphi 0, %s24
    %s41 = sphi 0, %s25
    %s45 = sphi 0, %s45
    %s47 = sphi 0, %s45
    %s48 = sphi 0, %s47
    %s62 = sphi 0, %s48
    %s66 = sphi 0, %s66
    %s68 = sphi 0, %s66
    %s69 = sphi 0, %s68
    %s83 = sphi 0, %s69
    %s87 = sphi 0, %s87
    %s89 = sphi 0, %s87
    %s90 = sphi 0, %s89
    %s104 = sphi 0, %s90
    %s108 = sphi 0, %s108
    %s110 = sphi 0, %s108
    %s111 = sphi 0, %s110
    %s125 = sphi 0, %s111
    %s131 = sphi 0, %s133
    %s134 = sphi 0, %s131
    %s135 = sphi 0, %s134
    %s151 = sphi 0, %s135
  $region4: #{segmentation_model_output_wrapper.1} parent=0 // loop_header_branch
    %14 = sbr.rel (%p12) target = $region8
  $region5: #{segmentation_model_output_wrapper.1} parent=0 // loop_body
    %s16 = ssub.s32 %s11, 1
    %s17 = ssub.s32 %s11, 2
    %s18 = sadd.s32 %s11, 1
    %s19 = ssub.s32 %s11, %s18
    %p20 = scmp.eq.s32.totalorder %s19, 0
    %s22 = sadd.s32 %s21, 1
    %s23 = scalar_select %p20, %s21, %s22
    %p26 = pneg %p20
    %p27 = scmp.eq.s32.totalorder %s11, 1
    %p28 = por %p26, %p27
    %p29 = scmp.ne.s32.totalorder %s21, %s24
    %p30 = scmp.eq.s32.totalorder %s11, 0
    %p31 = por %p29, %p30
    %p32 = scmp.ne.s32.totalorder %s21, %s24
    %p33 = scmp.eq.s32.totalorder %s16, 1
    %p34 = por %p32, %p33
    %p35 = scmp.ne.s32.totalorder %s24, %s25
    %p36 = scmp.eq.s32.totalorder %s16, 0
    %p37 = por %p35, %p36
    %p38 = scmp.ne.s32.totalorder %s24, %s25
    %p39 = scmp.eq.s32.totalorder %s17, 1
    %p40 = por %p38, %p39
    %p42 = scmp.ne.s32.totalorder %s25, %s41
    %p43 = scmp.eq.s32.totalorder %s17, 0
    %p44 = por %p42, %p43
    %s46 = sadd.s32 %s45, 1
    %p49 = scmp.eq.s32.totalorder %s11, 1
    %p50 = scmp.ne.s32.totalorder %s45, %s47
    %p51 = scmp.eq.s32.totalorder %s11, 0
    %p52 = por %p50, %p51
    %p53 = scmp.ne.s32.totalorder %s45, %s47
    %p54 = scmp.eq.s32.totalorder %s16, 1
    %p55 = por %p53, %p54
    %p56 = scmp.ne.s32.totalorder %s47, %s48
    %p57 = scmp.eq.s32.totalorder %s16, 0
    %p58 = por %p56, %p57
    %p59 = scmp.ne.s32.totalorder %s47, %s48
    %p60 = scmp.eq.s32.totalorder %s17, 1
    %p61 = por %p59, %p60
    %p63 = scmp.ne.s32.totalorder %s48, %s62
    %p64 = scmp.eq.s32.totalorder %s17, 0
    %p65 = por %p63, %p64
    %s67 = sadd.s32 %s66, 1
    %p70 = scmp.eq.s32.totalorder %s11, 1
    %p71 = scmp.ne.s32.totalorder %s66, %s68
    %p72 = scmp.eq.s32.totalorder %s11, 0
    %p73 = por %p71, %p72
    %p74 = scmp.ne.s32.totalorder %s66, %s68
    %p75 = scmp.eq.s32.totalorder %s16, 1
    %p76 = por %p74, %p75
    %p77 = scmp.ne.s32.totalorder %s68, %s69
    %p78 = scmp.eq.s32.totalorder %s16, 0
    %p79 = por %p77, %p78
    %p80 = scmp.ne.s32.totalorder %s68, %s69
    %p81 = scmp.eq.s32.totalorder %s17, 1
    %p82 = por %p80, %p81
    %p84 = scmp.ne.s32.totalorder %s69, %s83
    %p85 = scmp.eq.s32.totalorder %s17, 0
    %p86 = por %p84, %p85
    %s88 = sadd.s32 %s87, 1
    %p91 = scmp.eq.s32.totalorder %s11, 1
    %p92 = scmp.ne.s32.totalorder %s87, %s89
    %p93 = scmp.eq.s32.totalorder %s11, 0
    %p94 = por %p92, %p93
    %p95 = scmp.ne.s32.totalorder %s87, %s89
    %p96 = scmp.eq.s32.totalorder %s16, 1
    %p97 = por %p95, %p96
    %p98 = scmp.ne.s32.totalorder %s89, %s90
    %p99 = scmp.eq.s32.totalorder %s16, 0
    %p100 = por %p98, %p99
    %p101 = scmp.ne.s32.totalorder %s89, %s90
    %p102 = scmp.eq.s32.totalorder %s17, 1
    %p103 = por %p101, %p102
    %p105 = scmp.ne.s32.totalorder %s90, %s104
    %p106 = scmp.eq.s32.totalorder %s17, 0
    %p107 = por %p105, %p106
    %s109 = sadd.s32 %s108, 1
    %p112 = scmp.eq.s32.totalorder %s11, 1
    %p113 = scmp.ne.s32.totalorder %s108, %s110
    %p114 = scmp.eq.s32.totalorder %s11, 0
    %p115 = por %p113, %p114
    %p116 = scmp.ne.s32.totalorder %s108, %s110
    %p117 = scmp.eq.s32.totalorder %s16, 1
    %p118 = por %p116, %p117
    %p119 = scmp.ne.s32.totalorder %s110, %s111
    %p120 = scmp.eq.s32.totalorder %s16, 0
    %p121 = por %p119, %p120
    %p122 = scmp.ne.s32.totalorder %s110, %s111
    %p123 = scmp.eq.s32.totalorder %s17, 1
    %p124 = por %p122, %p123
    %p126 = scmp.ne.s32.totalorder %s111, %s125
    %p127 = scmp.eq.s32.totalorder %s17, 0
    %p128 = por %p126, %p127
    %s129 = ssub.s32 %s11, %s18
    %p130 = scmp.eq.s32.totalorder %s129, 0
    %s132 = sadd.s32 %s131, 1
    %s133 = scalar_select %p130, %s131, %s132
    %p136 = pneg %p130
    %p137 = scmp.eq.s32.totalorder %s11, 1
    %p138 = por %p136, %p137
    %p139 = scmp.ne.s32.totalorder %s131, %s134
    %p140 = scmp.eq.s32.totalorder %s11, 0
    %p141 = por %p139, %p140
    %p142 = scmp.ne.s32.totalorder %s131, %s134
    %p143 = scmp.eq.s32.totalorder %s16, 1
    %p144 = por %p142, %p143
    %p145 = scmp.ne.s32.totalorder %s134, %s135
    %p146 = scmp.eq.s32.totalorder %s16, 0
    %p147 = por %p145, %p146
    %p148 = scmp.ne.s32.totalorder %s134, %s135
    %p149 = scmp.eq.s32.totalorder %s17, 1
    %p150 = por %p148, %p149
    %p152 = scmp.ne.s32.totalorder %s135, %s151
    %p153 = scmp.eq.s32.totalorder %s17, 0
    %p154 = por %p152, %p153
    %p155 = scmp.le.s32.totalorder 1, %s11
    %p156 = scmp.lt.s32.totalorder %s11, 3
    %p157 = pnand %p155, %p156
    %p158 = pneg %p157
    // Predicated region
    $region9: #{segmentation_model_output_wrapper.1} parent=5 // pred_check
      _
    $region10: #{segmentation_model_output_wrapper.1} parent=5 // pred_check_branch
      %160 = sbr.rel (%p157) target = $region12
    $region11: #{segmentation_model_output_wrapper.1} parent=5 // pred_region
      %s161 = ssub.s32 %s11, 1
      // Predicated region
      $region13: #{segmentation_model_output_wrapper.1} parent=11 // pred_check
        %p162 = pneg %p58
      $region14: #{segmentation_model_output_wrapper.1} parent=11 // pred_check_branch
        %164 = sbr.rel (%p162) target = $region16
      $region15: #{segmentation_model_output_wrapper.1} parent=11 // pred_region
        _
      $region16: #{segmentation_model_output_wrapper.1} parent=11 // pred_fallthru
        _
      // Predicated region
      $region17: #{segmentation_model_output_wrapper.1} parent=11 // pred_check
        %p165 = pneg %p79
      $region18: #{segmentation_model_output_wrapper.1} parent=11 // pred_check_branch
        %167 = sbr.rel (%p165) target = $region20
      $region19: #{segmentation_model_output_wrapper.1} parent=11 // pred_region
        _
      $region20: #{segmentation_model_output_wrapper.1} parent=11 // pred_fallthru
        _
      // Predicated region
      $region21: #{segmentation_model_output_wrapper.1} parent=11 // pred_check
        %p168 = pneg %p100
      $region22: #{segmentation_model_output_wrapper.1} parent=11 // pred_check_branch
        %170 = sbr.rel (%p168) target = $region24
      $region23: #{segmentation_model_output_wrapper.1} parent=11 // pred_region
        _
      $region24: #{segmentation_model_output_wrapper.1} parent=11 // pred_fallthru
        _
      // Predicated region
      $region25: #{segmentation_model_output_wrapper.1} parent=11 // pred_check
        %p171 = pneg %p121
      $region26: #{segmentation_model_output_wrapper.1} parent=11 // pred_check_branch
        %173 = sbr.rel (%p171) target = $region28
      $region27: #{segmentation_model_output_wrapper.1} parent=11 // pred_region
        _
      $region28: #{segmentation_model_output_wrapper.1} parent=11 // pred_fallthru
        _
    $region12: #{segmentation_model_output_wrapper.1} parent=5 // pred_fallthru
      _
    %p174 = scmp.lt.s32.totalorder %s11, 2
    // Predicated region
    $region29: #{segmentation_model_output_wrapper.1} parent=5 // pred_check
      %p175 = pneg %p174
    $region30: #{segmentation_model_output_wrapper.1} parent=5 // pred_check_branch
      %177 = sbr.rel (%p175) target = $region32
    $region31: #{segmentation_model_output_wrapper.1} parent=5 // pred_region
      // Predicated region
      $region33: #{segmentation_model_output_wrapper.1} parent=31 // pred_check
        %p178 = pneg %p31
      $region34: #{segmentation_model_output_wrapper.1} parent=31 // pred_check_branch
        %180 = sbr.rel (%p178) target = $region36
      $region35: #{segmentation_model_output_wrapper.1} parent=31 // pred_region
        %p181 = scmp.lt.s32.totalorder %s11, 1
        %s182 = scalar_select %p181, %s11, 1
        %s183 = smul.addr %s182, 2
        %s184 = smul.addr %s183, 4
        %s185 = scalar_lea.vmem %s0, %s184
      $region36: #{segmentation_model_output_wrapper.1} parent=31 // pred_fallthru
        _
    $region32: #{segmentation_model_output_wrapper.1} parent=5 // pred_fallthru
      _
    %p186 = scmp.le.s32.totalorder 1, %s11
    %p187 = scmp.lt.s32.totalorder %s11, 3
    %p188 = pnand %p186, %p187
    %p189 = pneg %p188
    // Predicated region
    $region37: #{segmentation_model_output_wrapper.1} parent=5 // pred_check
      _
    $region38: #{segmentation_model_output_wrapper.1} parent=5 // pred_check_branch
      %191 = sbr.rel (%p188) target = $region40
    $region39: #{segmentation_model_output_wrapper.1} parent=5 // pred_region
      %s192 = ssub.s32 %s11, 1
      %p193 = scmp.lt.s32.totalorder %s16, 1
      %s194 = scalar_select %p193, %s16, 1
      %s195 = smul.addr %s194, 2
      %s196 = smul.addr %s195, 4
      %s197 = scalar_lea.vmem %s0, %s196
      %p198 = pneg %p37
      %p199 = pneg %p34
      %p200 = pneg %p58
      %p201 = pneg %p55
      %p202 = pneg %p79
      %p203 = pneg %p76
      %p204 = pneg %p100
      %p205 = pneg %p97
      %p206 = pneg %p121
      %p207 = pneg %p118
      %p208 = pneg %p147
      %p209 = pneg %p144
      %p210 = scmp.lt.s32.totalorder %s16, 1
      %s211 = scalar_select %p210, %s16, 1
      %s212 = smul.addr %s211, 2
      %s213 = smul.addr %s212, 4
      %s214 = scalar_lea.vmem %s5, %s213
      %p215 = scmp.lt.s32.totalorder %s16, 1
      %s216 = scalar_select %p215, %s16, 1
      %s217 = smul.addr %s216, 2
      %s218 = smul.addr %s217, 4
      %s219 = scalar_lea.vmem %s0, %s218
      %p220 = scmp.lt.s32.totalorder %s16, 1
      %s221 = scalar_select %p220, %s16, 1
      %s222 = smul.addr %s221, 2
      %s223 = smul.addr %s222, 4
      %s224 = scalar_lea.vmem %s5, %s223
      %v226 = vld [vmem:[%s219] sm:$0xff]
      %v228 = vcombine.high %v226, %v226
      %229 = vrot.lane.b32.xlu0 %v226, 17
      %v230 = vpop.permute.xlu0 %229
      %231 = vrot.lane.b32.xlu0 %v228, 17
      %v232 = vpop.permute.xlu0 %231
      %vm233 = vcmask 138240
      %v234 = vsel %vm233, %v230, %v232
      %v238 = vsel %vm233, 0.0, %v230
      %v239 = vsel %vm233, %v232, 0.0
      %v240 = vlaneseq
      %v241 = vand.u32 %v240, 127
      %v242 = vadd.s32 %v241, 128
      %vm243 = vcmp.lt.s32.totalorder %v241, 0
      %v244 = vsub.s32 0, %v241
      %v245 = vsel %vm243, %v244, %v241
      %v246 = vshrl.u32 %v245, 4
      %v247 = vand.u32 %v245, 15
      %v248 = vsub.s32 0, %v247
      %v249 = vsel %vm243, %v248, %v247
      %vm250 = vcmp.lt.s32.totalorder %v242, 0
      %v251 = vsub.s32 0, %v242
      %v252 = vsel %vm250, %v251, %v242
      %v253 = vshrl.u32 %v252, 4
      %v254 = vand.u32 %v252, 15
      %v255 = vsub.s32 0, %v254
      %v256 = vsel %vm250, %v255, %v254
      %vm257 = vcmp.ne.s32.totalorder %v249, 0
      %vm258 = vcmp.ne.s32.totalorder %v256, 0
      %vm259 = vcmp.lt.s32.totalorder %v249, 0
      %vm260 = vcmp.lt.s32.totalorder %v256, 0
      %vm261 = vmand %vm259, %vm257
      %vm262 = vmand %vm260, %vm258
      %v263 = vadd.s32 %v249, 16
      %v264 = vadd.s32 %v256, 16
      %v265 = vsel %vm261, %v263, %v249
      %v266 = vsel %vm262, %v264, %v256
      %v267 = vadd.s32 %v265, 4294967295
      %v268 = vadd.s32 %v266, 4294967295
      %vm269 = vcmp.ge.s32.totalorder %v267, 0
      %vm270 = vcmp.ge.s32.totalorder %v268, 0
      %vm271 = vcmp.lt.s32.totalorder %v267, 16
      %vm272 = vcmp.lt.s32.totalorder %v268, 16
      %vm273 = vmand %vm269, %vm271
      %vm274 = vmand %vm270, %vm272
      %v275 = vsel %vm273, %v238, 0.0
      %v276 = vsel %vm274, %v234, 0.0
      %v277 = vld [vmem:[%s1] sm:$0xf]
      %v278 = vpack.c.bf16 %v275, %v275
      %v279 = vpack.c.bf16 %v276, %v276
      %s280 = scalar_lea.vmem %s1, 4
      %v281 = vld [vmem:[%s280] sm:$0xf]
      %v282 = vpack.c.bf16 %v238, %v238
      %v283 = vpack.c.bf16 %v234, %v234
      %v284 = vpack.c.bf16 %v239, %v239
      %288 = vrot.lane.b32.xlu0 %v282, 127
      %v289 = vpop.permute.xlu0 %288
      %290 = vrot.lane.b32.xlu0 %v283, 127
      %v291 = vpop.permute.xlu0 %290
      %292 = vrot.lane.b32.xlu0 %v284, 127
      %v293 = vpop.permute.xlu0 %292
      %vm294 = vcmask 1039360
      %v295 = vsel %vm294, %v289, %v291
      %v296 = vsel %vm294, %v291, %v293
      %vm297 = vcmask 31744
      %v299 = vsel %vm297, %v281, 0
      %vm301 = vcmask 1041408
      %v303 = vsel %vm301, %v295, 0
      %v306 = vsel %vm301, %v296, 0
      %308 = vmatprep.subr.bf16.mxu0 %v306
      %309 = vmatpush1.bf16.msra.mxu0 %v303
      %310 = vmatprep.subr.bf16.mxu0 0
      %311 = vmatpush1.bf16.msra.mxu0 0
      %312 = vmatprep.subr.bf16.mxu0 0
      %313 = vmatpush1.bf16.msra.mxu0 0
      %314 = vmatprep.subr.bf16.mxu0 0
      %315 = vmatpush1.bf16.msra.mxu0 0
      %316 = vmatprep.subr.bf16.mxu0 0
      %317 = vmatpush1.bf16.msra.mxu0 0
      %318 = vmatprep.subr.bf16.mxu0 0
      %319 = vmatpush1.bf16.msra.mxu0 0
      %320 = vmatprep.subr.bf16.mxu0 0
      %321 = vmatpush1.bf16.msra.mxu0 0
      %322 = vmatprep.subr.bf16.mxu0 0
      %323 = vmatpush1.bf16.msra.mxu0 0
      %324 = vmatprep.subr.bf16.mxu0 0
      %325 = vmatpush1.bf16.msra.mxu0 0
      %326 = vmatprep.subr.bf16.mxu0 0
      %327 = vmatpush1.bf16.msra.mxu0 0
      %328 = vmatprep.subr.bf16.mxu0 0
      %329 = vmatpush1.bf16.msra.mxu0 0
      %330 = vmatprep.subr.bf16.mxu0 0
      %331 = vmatpush1.bf16.msra.mxu0 0
      %332 = vmatprep.subr.bf16.mxu0 0
      %333 = vmatpush1.bf16.msra.mxu0 0
      %334 = vmatprep.subr.bf16.mxu0 0
      %335 = vmatpush1.bf16.msra.mxu0 0
      %336 = vmatprep.subr.bf16.mxu0 0
      %337 = vmatpush1.bf16.msra.mxu0 0
      %338 = vmatprep.subr.bf16.mxu0 0
      %339 = vmatpush1.bf16.msra.mxu0 0
      %340 = vmatprep.mubr.bf16.mxu0 0
      %341 = vmatmul.mubr.bf16.gmra.mrb[0].mxu0 %v299
      %v342 = vpop.f32.mrb[0].mxu0
      %v343 = vadd.f32 0.0, %v342
      %v344 = vpop.f32.mrb[0].mxu0
      %v345 = vadd.f32 0.0, %v344
      %v346 = vpop.f32.mrb[0].mxu0
      %v347 = vpop.f32.mrb[0].mxu0
      %348 = vdwg.mxu0
      %v350 = vsel %vm297, %v277, 0
      %v353 = vsel %vm301, %v278, 0
      %v356 = vsel %vm301, %v279, 0
      %358 = vmatprep.subr.bf16.mxu0 %v356
      %359 = vmatpush1.bf16.msra.mxu0 %v353
      %360 = vmatprep.subr.bf16.mxu0 0
      %361 = vmatpush1.bf16.msra.mxu0 0
      %362 = vmatprep.subr.bf16.mxu0 0
      %363 = vmatpush1.bf16.msra.mxu0 0
      %364 = vmatprep.subr.bf16.mxu0 0
      %365 = vmatpush1.bf16.msra.mxu0 0
      %366 = vmatprep.subr.bf16.mxu0 0
      %367 = vmatpush1.bf16.msra.mxu0 0
      %368 = vmatprep.subr.bf16.mxu0 0
      %369 = vmatpush1.bf16.msra.mxu0 0
      %370 = vmatprep.subr.bf16.mxu0 0
      %371 = vmatpush1.bf16.msra.mxu0 0
      %372 = vmatprep.subr.bf16.mxu0 0
      %373 = vmatpush1.bf16.msra.mxu0 0
      %374 = vmatprep.subr.bf16.mxu0 0
      %375 = vmatpush1.bf16.msra.mxu0 0
      %376 = vmatprep.subr.bf16.mxu0 0
      %377 = vmatpush1.bf16.msra.mxu0 0
      %378 = vmatprep.subr.bf16.mxu0 0
      %379 = vmatpush1.bf16.msra.mxu0 0
      %380 = vmatprep.subr.bf16.mxu0 0
      %381 = vmatpush1.bf16.msra.mxu0 0
      %382 = vmatprep.subr.bf16.mxu0 0
      %383 = vmatpush1.bf16.msra.mxu0 0
      %384 = vmatprep.subr.bf16.mxu0 0
      %385 = vmatpush1.bf16.msra.mxu0 0
      %386 = vmatprep.subr.bf16.mxu0 0
      %387 = vmatpush1.bf16.msra.mxu0 0
      %388 = vmatprep.subr.bf16.mxu0 0
      %389 = vmatpush1.bf16.msra.mxu0 0
      %390 = vmatprep.mubr.bf16.mxu0 0
      %391 = vmatmul.mubr.bf16.gmra.mrb[0].mxu0 %v350
      %v392 = vpop.f32.mrb[0].mxu0
      %v393 = vadd.f32 %v343, %v392
      %v394 = vpop.f32.mrb[0].mxu0
      %v395 = vadd.f32 %v345, %v394
      %v396 = vpop.f32.mrb[0].mxu0
      %v397 = vpop.f32.mrb[0].mxu0
      %398 = vdwg.mxu0
      %v399 = vadd.s32 %v265, 1
      %v400 = vadd.s32 %v266, 1
      %vm401 = vcmp.ge.s32.totalorder %v399, 0
      %vm402 = vcmp.ge.s32.totalorder %v400, 0
      %vm403 = vcmp.lt.s32.totalorder %v399, 16
      %vm404 = vcmp.lt.s32.totalorder %v400, 16
      %vm405 = vmand %vm401, %vm403
      %vm406 = vmand %vm402, %vm404
      %409 = vrot.lane.b32.xlu0 %v238, 126
      %v410 = vpop.permute.xlu0 %409
      %411 = vrot.lane.b32.xlu0 %v234, 126
      %v412 = vpop.permute.xlu0 %411
      %413 = vrot.lane.b32.xlu0 %v239, 126
      %v414 = vpop.permute.xlu0 %413
      %vm415 = vcmask 1031168
      %v416 = vsel %vm415, %v410, %v412
      %v417 = vsel %vm415, %v412, %v414
      %v420 = vsel %vm405, %v416, 0.0
      %v421 = vsel %vm406, %v417, 0.0
      %s422 = scalar_lea.vmem %s1, 8
      %v423 = vld [vmem:[%s422] sm:$0xf]
      %v424 = vpack.c.bf16 %v420, %v420
      %v425 = vpack.c.bf16 %v421, %v421
      %v427 = vsel %vm297, %v423, 0
      %v430 = vsel %vm301, %v424, 0
      %v433 = vsel %vm301, %v425, 0
      %435 = vmatprep.subr.bf16.mxu0 %v433
      %436 = vmatpush1.bf16.msra.mxu0 %v430
      %437 = vmatprep.subr.bf16.mxu0 0
      %438 = vmatpush1.bf16.msra.mxu0 0
      %439 = vmatprep.subr.bf16.mxu0 0
      %440 = vmatpush1.bf16.msra.mxu0 0
      %441 = vmatprep.subr.bf16.mxu0 0
      %442 = vmatpush1.bf16.msra.mxu0 0
      %443 = vmatprep.subr.bf16.mxu0 0
      %444 = vmatpush1.bf16.msra.mxu0 0
      %445 = vmatprep.subr.bf16.mxu0 0
      %446 = vmatpush1.bf16.msra.mxu0 0
      %447 = vmatprep.subr.bf16.mxu0 0
      %448 = vmatpush1.bf16.msra.mxu0 0
      %449 = vmatprep.subr.bf16.mxu0 0
      %450 = vmatpush1.bf16.msra.mxu0 0
      %451 = vmatprep.subr.bf16.mxu0 0
      %452 = vmatpush1.bf16.msra.mxu0 0
      %453 = vmatprep.subr.bf16.mxu0 0
      %454 = vmatpush1.bf16.msra.mxu0 0
      %455 = vmatprep.subr.bf16.mxu0 0
      %456 = vmatpush1.bf16.msra.mxu0 0
      %457 = vmatprep.subr.bf16.mxu0 0
      %458 = vmatpush1.bf16.msra.mxu0 0
      %459 = vmatprep.subr.bf16.mxu0 0
      %460 = vmatpush1.bf16.msra.mxu0 0
      %461 = vmatprep.subr.bf16.mxu0 0
      %462 = vmatpush1.bf16.msra.mxu0 0
      %463 = vmatprep.subr.bf16.mxu0 0
      %464 = vmatpush1.bf16.msra.mxu0 0
      %465 = vmatprep.subr.bf16.mxu0 0
      %466 = vmatpush1.bf16.msra.mxu0 0
      %467 = vmatprep.mubr.bf16.mxu0 0
      %468 = vmatmul.mubr.bf16.gmra.mrb[0].mxu0 %v427
      %v469 = vpop.f32.mrb[0].mxu0
      %v470 = vadd.f32 0.0, %v469
      %v471 = vpop.f32.mrb[0].mxu0
      %v472 = vadd.f32 0.0, %v471
      %v473 = vpop.f32.mrb[0].mxu0
      %v474 = vpop.f32.mrb[0].mxu0
      %475 = vdwg.mxu0
      %v476 = vadd.f32 %v393, %v470
      %v477 = vadd.f32 %v395, %v472
      %478 = vrot.lane.b32.xlu0 %v238, 112
      %v479 = vpop.permute.xlu0 %478
      %480 = vrot.lane.b32.xlu0 %v234, 112
      %v481 = vpop.permute.xlu0 %480
      %482 = vrot.lane.b32.xlu0 %v239, 112
      %v483 = vpop.permute.xlu0 %482
      %vm484 = vcmask 916480
      %v485 = vsel %vm484, %v479, %v481
      %v486 = vsel %vm484, %v481, %v483
      %v489 = vsel %vm273, %v485, 0.0
      %v490 = vsel %vm274, %v486, 0.0
      %s491 = scalar_lea.vmem %s1, 12
      %v492 = vld [vmem:[%s491] sm:$0xf]
      %v493 = vpack.c.bf16 %v489, %v489
      %v494 = vpack.c.bf16 %v490, %v490
      %v496 = vsel %vm297, %v492, 0
      %v499 = vsel %vm301, %v493, 0
      %v502 = vsel %vm301, %v494, 0
      %504 = vmatprep.subr.bf16.mxu0 %v502
      %505 = vmatpush1.bf16.msra.mxu0 %v499
      %506 = vmatprep.subr.bf16.mxu0 0
      %507 = vmatpush1.bf16.msra.mxu0 0
      %508 = vmatprep.subr.bf16.mxu0 0
      %509 = vmatpush1.bf16.msra.mxu0 0
      %510 = vmatprep.subr.bf16.mxu0 0
      %511 = vmatpush1.bf16.msra.mxu0 0
      %512 = vmatprep.subr.bf16.mxu0 0
      %513 = vmatpush1.bf16.msra.mxu0 0
      %514 = vmatprep.subr.bf16.mxu0 0
      %515 = vmatpush1.bf16.msra.mxu0 0
      %516 = vmatprep.subr.bf16.mxu0 0
      %517 = vmatpush1.bf16.msra.mxu0 0
      %518 = vmatprep.subr.bf16.mxu0 0
      %519 = vmatpush1.bf16.msra.mxu0 0
      %520 = vmatprep.subr.bf16.mxu0 0
      %521 = vmatpush1.bf16.msra.mxu0 0
      %522 = vmatprep.subr.bf16.mxu0 0
      %523 = vmatpush1.bf16.msra.mxu0 0
      %524 = vmatprep.subr.bf16.mxu0 0
      %525 = vmatpush1.bf16.msra.mxu0 0
      %526 = vmatprep.subr.bf16.mxu0 0
      %527 = vmatpush1.bf16.msra.mxu0 0
      %528 = vmatprep.subr.bf16.mxu0 0
      %529 = vmatpush1.bf16.msra.mxu0 0
      %530 = vmatprep.subr.bf16.mxu0 0
      %531 = vmatpush1.bf16.msra.mxu0 0
      %532 = vmatprep.subr.bf16.mxu0 0
      %533 = vmatpush1.bf16.msra.mxu0 0
      %534 = vmatprep.subr.bf16.mxu0 0
      %535 = vmatpush1.bf16.msra.mxu0 0
      %536 = vmatprep.mubr.bf16.mxu0 0
      %537 = vmatmul.mubr.bf16.gmra.mrb[0].mxu0 %v496
      %v538 = vpop.f32.mrb[0].mxu0
      %v539 = vadd.f32 0.0, %v538
      %v540 = vpop.f32.mrb[0].mxu0
      %v541 = vadd.f32 0.0, %v540
      %v542 = vpop.f32.mrb[0].mxu0
      %v543 = vpop.f32.mrb[0].mxu0
      %544 = vdwg.mxu0
      %v545 = vadd.f32 %v476, %v539
      %v546 = vadd.f32 %v477, %v541
      %s547 = scalar_lea.vmem %s1, 16
      %v548 = vld [vmem:[%s547] sm:$0xf]
      %549 = vrot.lane.b32.xlu0 %v282, 111
      %v550 = vpop.permute.xlu0 %549
      %551 = vrot.lane.b32.xlu0 %v283, 111
      %v552 = vpop.permute.xlu0 %551
      %553 = vrot.lane.b32.xlu0 %v284, 111
      %v554 = vpop.permute.xlu0 %553
      %vm555 = vcmask 908288
      %v556 = vsel %vm555, %v550, %v552
      %v557 = vsel %vm555, %v552, %v554
      %v559 = vsel %vm297, %v548, 0
      %v562 = vsel %vm301, %v556, 0
      %v565 = vsel %vm301, %v557, 0
      %567 = vmatprep.subr.bf16.mxu0 %v565
      %568 = vmatpush1.bf16.msra.mxu0 %v562
      %569 = vmatprep.subr.bf16.mxu0 0
      %570 = vmatpush1.bf16.msra.mxu0 0
      %571 = vmatprep.subr.bf16.mxu0 0
      %572 = vmatpush1.bf16.msra.mxu0 0
      %573 = vmatprep.subr.bf16.mxu0 0
      %574 = vmatpush1.bf16.msra.mxu0 0
      %575 = vmatprep.subr.bf16.mxu0 0
      %576 = vmatpush1.bf16.msra.mxu0 0
      %577 = vmatprep.subr.bf16.mxu0 0
      %578 = vmatpush1.bf16.msra.mxu0 0
      %579 = vmatprep.subr.bf16.mxu0 0
      %580 = vmatpush1.bf16.msra.mxu0 0
      %581 = vmatprep.subr.bf16.mxu0 0
      %582 = vmatpush1.bf16.msra.mxu0 0
      %583 = vmatprep.subr.bf16.mxu0 0
      %584 = vmatpush1.bf16.msra.mxu0 0
      %585 = vmatprep.subr.bf16.mxu0 0
      %586 = vmatpush1.bf16.msra.mxu0 0
      %587 = vmatprep.subr.bf16.mxu0 0
      %588 = vmatpush1.bf16.msra.mxu0 0
      %589 = vmatprep.subr.bf16.mxu0 0
      %590 = vmatpush1.bf16.msra.mxu0 0
      %591 = vmatprep.subr.bf16.mxu0 0
      %592 = vmatpush1.bf16.msra.mxu0 0
      %593 = vmatprep.subr.bf16.mxu0 0
      %594 = vmatpush1.bf16.msra.mxu0 0
      %595 = vmatprep.subr.bf16.mxu0 0
      %596 = vmatpush1.bf16.msra.mxu0 0
      %597 = vmatprep.subr.bf16.mxu0 0
      %598 = vmatpush1.bf16.msra.mxu0 0
      %599 = vmatprep.mubr.bf16.mxu0 0
      %600 = vmatmul.mubr.bf16.gmra.mrb[0].mxu0 %v559
      %v601 = vpop.f32.mrb[0].mxu0
      %v602 = vadd.f32 0.0, %v601
      %v603 = vpop.f32.mrb[0].mxu0
      %v604 = vadd.f32 0.0, %v603
      %v605 = vpop.f32.mrb[0].mxu0
      %v606 = vpop.f32.mrb[0].mxu0
      %607 = vdwg.mxu0
      %v608 = vadd.f32 %v545, %v602
      %v609 = vadd.f32 %v546, %v604
      %610 = vrot.lane.b32.xlu0 %v238, 110
      %v611 = vpop.permute.xlu0 %610
      %612 = vrot.lane.b32.xlu0 %v234, 110
      %v613 = vpop.permute.xlu0 %612
      %614 = vrot.lane.b32.xlu0 %v239, 110
      %v615 = vpop.permute.xlu0 %614
      %vm616 = vcmask 900096
      %v617 = vsel %vm616, %v611, %v613
      %v618 = vsel %vm616, %v613, %v615
      %v621 = vsel %vm405, %v617, 0.0
      %v622 = vsel %vm406, %v618, 0.0
      %s623 = scalar_lea.vmem %s1, 20
      %v624 = vld [vmem:[%s623] sm:$0xf]
      %v625 = vpack.c.bf16 %v621, %v621
      %v626 = vpack.c.bf16 %v622, %v622
      %v628 = vsel %vm297, %v624, 0
      %v631 = vsel %vm301, %v625, 0
      %v634 = vsel %vm301, %v626, 0
      %636 = vmatprep.subr.bf16.mxu0 %v634
      %637 = vmatpush1.bf16.msra.mxu0 %v631
      %638 = vmatprep.subr.bf16.mxu0 0
      %639 = vmatpush1.bf16.msra.mxu0 0
      %640 = vmatprep.subr.bf16.mxu0 0
      %641 = vmatpush1.bf16.msra.mxu0 0
      %642 = vmatprep.subr.bf16.mxu0 0
      %643 = vmatpush1.bf16.msra.mxu0 0
      %644 = vmatprep.subr.bf16.mxu0 0
      %645 = vmatpush1.bf16.msra.mxu0 0
      %646 = vmatprep.subr.bf16.mxu0 0
      %647 = vmatpush1.bf16.msra.mxu0 0
      %648 = vmatprep.subr.bf16.mxu0 0
      %649 = vmatpush1.bf16.msra.mxu0 0
      %650 = vmatprep.subr.bf16.mxu0 0
      %651 = vmatpush1.bf16.msra.mxu0 0
      %652 = vmatprep.subr.bf16.mxu0 0
      %653 = vmatpush1.bf16.msra.mxu0 0
      %654 = vmatprep.subr.bf16.mxu0 0
      %655 = vmatpush1.bf16.msra.mxu0 0
      %656 = vmatprep.subr.bf16.mxu0 0
      %657 = vmatpush1.bf16.msra.mxu0 0
      %658 = vmatprep.subr.bf16.mxu0 0
      %659 = vmatpush1.bf16.msra.mxu0 0
      %660 = vmatprep.subr.bf16.mxu0 0
      %661 = vmatpush1.bf16.msra.mxu0 0
      %662 = vmatprep.subr.bf16.mxu0 0
      %663 = vmatpush1.bf16.msra.mxu0 0
      %664 = vmatprep.subr.bf16.mxu0 0
      %665 = vmatpush1.bf16.msra.mxu0 0
      %666 = vmatprep.subr.bf16.mxu0 0
      %667 = vmatpush1.bf16.msra.mxu0 0
      %668 = vmatprep.mubr.bf16.mxu0 0
      %669 = vmatmul.mubr.bf16.gmra.mrb[0].mxu0 %v628
      %v670 = vpop.f32.mrb[0].mxu0
      %v671 = vadd.f32 0.0, %v670
      %v672 = vpop.f32.mrb[0].mxu0
      %v673 = vadd.f32 0.0, %v672
      %v674 = vpop.f32.mrb[0].mxu0
      %v675 = vpop.f32.mrb[0].mxu0
      %676 = vdwg.mxu0
      %v677 = vadd.f32 %v608, %v671
      %v678 = vadd.f32 %v609, %v673
      %679 = vrot.lane.b32.xlu0 %v238, 96
      %v680 = vpop.permute.xlu0 %679
      %681 = vrot.lane.b32.xlu0 %v234, 96
      %v682 = vpop.permute.xlu0 %681
      %683 = vrot.lane.b32.xlu0 %v239, 96
      %v684 = vpop.permute.xlu0 %683
      %vm685 = vcmask 785408
      %v686 = vsel %vm685, %v680, %v682
      %v687 = vsel %vm685, %v682, %v684
      %v690 = vsel %vm273, %v686, 0.0
      %v691 = vsel %vm274, %v687, 0.0
      %s692 = scalar_lea.vmem %s1, 24
      %v693 = vld [vmem:[%s692] sm:$0xf]
      %v694 = vpack.c.bf16 %v690, %v690
      %v695 = vpack.c.bf16 %v691, %v691
      %v697 = vsel %vm297, %v693, 0
      %v700 = vsel %vm301, %v694, 0
      %v703 = vsel %vm301, %v695, 0
      %705 = vmatprep.subr.bf16.mxu0 %v703
      %706 = vmatpush1.bf16.msra.mxu0 %v700
      %707 = vmatprep.subr.bf16.mxu0 0
      %708 = vmatpush1.bf16.msra.mxu0 0
      %709 = vmatprep.subr.bf16.mxu0 0
      %710 = vmatpush1.bf16.msra.mxu0 0
      %711 = vmatprep.subr.bf16.mxu0 0
      %712 = vmatpush1.bf16.msra.mxu0 0
      %713 = vmatprep.subr.bf16.mxu0 0
      %714 = vmatpush1.bf16.msra.mxu0 0
      %715 = vmatprep.subr.bf16.mxu0 0
      %716 = vmatpush1.bf16.msra.mxu0 0
      %717 = vmatprep.subr.bf16.mxu0 0
      %718 = vmatpush1.bf16.msra.mxu0 0
      %719 = vmatprep.subr.bf16.mxu0 0
      %720 = vmatpush1.bf16.msra.mxu0 0
      %721 = vmatprep.subr.bf16.mxu0 0
      %722 = vmatpush1.bf16.msra.mxu0 0
      %723 = vmatprep.subr.bf16.mxu0 0
      %724 = vmatpush1.bf16.msra.mxu0 0
      %725 = vmatprep.subr.bf16.mxu0 0
      %726 = vmatpush1.bf16.msra.mxu0 0
      %727 = vmatprep.subr.bf16.mxu0 0
      %728 = vmatpush1.bf16.msra.mxu0 0
      %729 = vmatprep.subr.bf16.mxu0 0
      %730 = vmatpush1.bf16.msra.mxu0 0
      %731 = vmatprep.subr.bf16.mxu0 0
      %732 = vmatpush1.bf16.msra.mxu0 0
      %733 = vmatprep.subr.bf16.mxu0 0
      %734 = vmatpush1.bf16.msra.mxu0 0
      %735 = vmatprep.subr.bf16.mxu0 0
      %736 = vmatpush1.bf16.msra.mxu0 0
      %737 = vmatprep.mubr.bf16.mxu0 0
      %738 = vmatmul.mubr.bf16.gmra.mrb[0].mxu0 %v697
      %v739 = vpop.f32.mrb[0].mxu0
      %v740 = vadd.f32 0.0, %v739
      %v741 = vpop.f32.mrb[0].mxu0
      %v742 = vadd.f32 0.0, %v741
      %v743 = vpop.f32.mrb[0].mxu0
      %v744 = vpop.f32.mrb[0].mxu0
      %745 = vdwg.mxu0
      %v746 = vadd.f32 %v677, %v740
      %v747 = vadd.f32 %v678, %v742
      %s748 = scalar_lea.vmem %s1, 28
      %v749 = vld [vmem:[%s748] sm:$0xf]
      %750 = vrot.lane.b32.xlu0 %v282, 95
      %v751 = vpop.permute.xlu0 %750
      %752 = vrot.lane.b32.xlu0 %v283, 95
      %v753 = vpop.permute.xlu0 %752
      %754 = vrot.lane.b32.xlu0 %v284, 95
      %v755 = vpop.permute.xlu0 %754
      %vm756 = vcmask 777216
      %v757 = vsel %vm756, %v751, %v753
      %v758 = vsel %vm756, %v753, %v755
      %v760 = vsel %vm297, %v749, 0
      %v763 = vsel %vm301, %v757, 0
      %v766 = vsel %vm301, %v758, 0
      %768 = vmatprep.subr.bf16.mxu0 %v766
      %769 = vmatpush1.bf16.msra.mxu0 %v763
      %770 = vmatprep.subr.bf16.mxu0 0
      %771 = vmatpush1.bf16.msra.mxu0 0
      %772 = vmatprep.subr.bf16.mxu0 0
      %773 = vmatpush1.bf16.msra.mxu0 0
      %774 = vmatprep.subr.bf16.mxu0 0
      %775 = vmatpush1.bf16.msra.mxu0 0
      %776 = vmatprep.subr.bf16.mxu0 0
      %777 = vmatpush1.bf16.msra.mxu0 0
      %778 = vmatprep.subr.bf16.mxu0 0
      %779 = vmatpush1.bf16.msra.mxu0 0
      %780 = vmatprep.subr.bf16.mxu0 0
      %781 = vmatpush1.bf16.msra.mxu0 0
      %782 = vmatprep.subr.bf16.mxu0 0
      %783 = vmatpush1.bf16.msra.mxu0 0
      %784 = vmatprep.subr.bf16.mxu0 0
      %785 = vmatpush1.bf16.msra.mxu0 0
      %786 = vmatprep.subr.bf16.mxu0 0
      %787 = vmatpush1.bf16.msra.mxu0 0
      %788 = vmatprep.subr.bf16.mxu0 0
      %789 = vmatpush1.bf16.msra.mxu0 0
      %790 = vmatprep.subr.bf16.mxu0 0
      %791 = vmatpush1.bf16.msra.mxu0 0
      %792 = vmatprep.subr.bf16.mxu0 0
      %793 = vmatpush1.bf16.msra.mxu0 0
      %794 = vmatprep.subr.bf16.mxu0 0
      %795 = vmatpush1.bf16.msra.mxu0 0
      %796 = vmatprep.subr.bf16.mxu0 0
      %797 = vmatpush1.bf16.msra.mxu0 0
      %798 = vmatprep.subr.bf16.mxu0 0
      %799 = vmatpush1.bf16.msra.mxu0 0
      %800 = vmatprep.mubr.bf16.mxu0 0
      %801 = vmatmul.mubr.bf16.gmra.mrb[0].mxu0 %v760
      %v802 = vpop.f32.mrb[0].mxu0
      %v803 = vadd.f32 0.0, %v802
      %v804 = vpop.f32.mrb[0].mxu0
      %v805 = vadd.f32 0.0, %v804
      %v806 = vpop.f32.mrb[0].mxu0
      %v807 = vpop.f32.mrb[0].mxu0
      %808 = vdwg.mxu0
      %v809 = vadd.f32 %v746, %v803
      %v810 = vadd.f32 %v747, %v805
      %811 = vrot.lane.b32.xlu0 %v238, 94
      %v812 = vpop.permute.xlu0 %811
      %813 = vrot.lane.b32.xlu0 %v234, 94
      %v814 = vpop.permute.xlu0 %813
      %815 = vrot.lane.b32.xlu0 %v239, 94
      %v816 = vpop.permute.xlu0 %815
      %vm817 = vcmask 769024
      %v818 = vsel %vm817, %v812, %v814
      %v819 = vsel %vm817, %v814, %v816
      %v822 = vsel %vm405, %v818, 0.0
      %v823 = vsel %vm406, %v819, 0.0
      %s824 = scalar_lea.vmem %s1, 32
      %v825 = vld [vmem:[%s824] sm:$0xf]
      %v826 = vpack.c.bf16 %v822, %v822
      %v827 = vpack.c.bf16 %v823, %v823
      %v829 = vsel %vm297, %v825, 0
      %v832 = vsel %vm301, %v826, 0
      %v835 = vsel %vm301, %v827, 0
      %837 = vmatprep.subr.bf16.mxu0 %v835
      %838 = vmatpush1.bf16.msra.mxu0 %v832
      %839 = vmatprep.subr.bf16.mxu0 0
      %840 = vmatpush1.bf16.msra.mxu0 0
      %841 = vmatprep.subr.bf16.mxu0 0
      %842 = vmatpush1.bf16.msra.mxu0 0
      %843 = vmatprep.subr.bf16.mxu0 0
      %844 = vmatpush1.bf16.msra.mxu0 0
      %845 = vmatprep.subr.bf16.mxu0 0
      %846 = vmatpush1.bf16.msra.mxu0 0
      %847 = vmatprep.subr.bf16.mxu0 0
      %848 = vmatpush1.bf16.msra.mxu0 0
      %849 = vmatprep.subr.bf16.mxu0 0
      %850 = vmatpush1.bf16.msra.mxu0 0
      %851 = vmatprep.subr.bf16.mxu0 0
      %852 = vmatpush1.bf16.msra.mxu0 0
      %853 = vmatprep.subr.bf16.mxu0 0
      %854 = vmatpush1.bf16.msra.mxu0 0
      %855 = vmatprep.subr.bf16.mxu0 0
      %856 = vmatpush1.bf16.msra.mxu0 0
      %857 = vmatprep.subr.bf16.mxu0 0
      %858 = vmatpush1.bf16.msra.mxu0 0
      %859 = vmatprep.subr.bf16.mxu0 0
      %860 = vmatpush1.bf16.msra.mxu0 0
      %861 = vmatprep.subr.bf16.mxu0 0
      %862 = vmatpush1.bf16.msra.mxu0 0
      %863 = vmatprep.subr.bf16.mxu0 0
      %864 = vmatpush1.bf16.msra.mxu0 0
      %865 = vmatprep.subr.bf16.mxu0 0
      %866 = vmatpush1.bf16.msra.mxu0 0
      %867 = vmatprep.subr.bf16.mxu0 0
      %868 = vmatpush1.bf16.msra.mxu0 0
      %869 = vmatprep.mubr.bf16.mxu0 0
      %870 = vmatmul.mubr.bf16.gmra.mrb[0].mxu0 %v829
      %v871 = vpop.f32.mrb[0].mxu0
      %v872 = vadd.f32 0.0, %v871
      %v873 = vpop.f32.mrb[0].mxu0
      %v874 = vadd.f32 0.0, %v873
      %v875 = vpop.f32.mrb[0].mxu0
      %v876 = vpop.f32.mrb[0].mxu0
      %877 = vdwg.mxu0
      %v878 = vadd.f32 %v809, %v872
      %v879 = vadd.f32 %v810, %v874
      %v880 = vld [vmem:[%s2] sm:$0xff]
      %882 = vset.pattern.permute.xlu0 0
      %883 = vperm.xlu0 %882, %v880
      %v884 = vpop.permute.xlu0 %883
      %v886 = vadd.f32 %v878, %v884
      %v887 = vadd.f32 %v879, %v884
      %v888 = vmax.f32 %v886, 0.0
      %v889 = vmax.f32 %v887, 0.0
      %v890 = vld [vmem:[%s3] sm:$0x3]
      %v891 = vpack.c.bf16 %v888, %v888
      %v892 = vpack.c.bf16 %v889, %v889
      %v893 = vld [vmem:[%s4] sm:$0x7]
      %895 = vset.pattern.permute.xlu0 0
      %896 = vperm.xlu0 %895, %v893
      %v897 = vpop.permute.xlu0 %896
      %vm899 = vcmask 64512
      %v901 = vsel %vm899, %v890, 0
      %vm903 = vcmask 1043456
      %v905 = vsel %vm903, %v891, 0
      %v908 = vsel %vm903, %v892, 0
      %910 = vmatprep.subr.bf16.mxu0 %v908
      %911 = vmatpush1.bf16.msra.mxu0 %v905
      %912 = vmatprep.subr.bf16.mxu0 0
      %913 = vmatpush1.bf16.msra.mxu0 0
      %914 = vmatprep.subr.bf16.mxu0 0
      %915 = vmatpush1.bf16.msra.mxu0 0
      %916 = vmatprep.subr.bf16.mxu0 0
      %917 = vmatpush1.bf16.msra.mxu0 0
      %918 = vmatprep.subr.bf16.mxu0 0
      %919 = vmatpush1.bf16.msra.mxu0 0
      %920 = vmatprep.subr.bf16.mxu0 0
      %921 = vmatpush1.bf16.msra.mxu0 0
      %922 = vmatprep.subr.bf16.mxu0 0
      %923 = vmatpush1.bf16.msra.mxu0 0
      %924 = vmatprep.subr.bf16.mxu0 0
      %925 = vmatpush1.bf16.msra.mxu0 0
      %926 = vmatprep.subr.bf16.mxu0 0
      %927 = vmatpush1.bf16.msra.mxu0 0
      %928 = vmatprep.subr.bf16.mxu0 0
      %929 = vmatpush1.bf16.msra.mxu0 0
      %930 = vmatprep.subr.bf16.mxu0 0
      %931 = vmatpush1.bf16.msra.mxu0 0
      %932 = vmatprep.subr.bf16.mxu0 0
      %933 = vmatpush1.bf16.msra.mxu0 0
      %934 = vmatprep.subr.bf16.mxu0 0
      %935 = vmatpush1.bf16.msra.mxu0 0
      %936 = vmatprep.subr.bf16.mxu0 0
      %937 = vmatpush1.bf16.msra.mxu0 0
      %938 = vmatprep.subr.bf16.mxu0 0
      %939 = vmatpush1.bf16.msra.mxu0 0
      %940 = vmatprep.subr.bf16.mxu0 0
      %941 = vmatpush1.bf16.msra.mxu0 0
      %942 = vmatprep.mubr.bf16.mxu0 0
      %943 = vmatmul.mubr.bf16.gmra.mrb[0].mxu0 %v901
      %v944 = vpop.f32.mrb[0].mxu0
      %v945 = vadd.f32 %v897, %v944
      %v946 = vpop.f32.mrb[0].mxu0
      %v947 = vadd.f32 %v897, %v946
      %v948 = vpop.f32.mrb[0].mxu0
      %v949 = vpop.f32.mrb[0].mxu0
      %950 = vdwg.mxu0
      %v953 = vcombine.low %v945, %v947
      %955 = vst [vmem:[%s224] sm:$0x77] %v953
      %p956 = scmp.lt.s32.totalorder %s16, 1
      %s957 = scalar_select %p956, %s16, 1
      %s958 = smul.addr %s957, 2
      %s959 = smul.addr %s958, 4
      %s960 = scalar_lea.vmem %s5, %s959
      // Predicated region
      $region41: #{segmentation_model_output_wrapper.1} parent=39 // pred_check
        %p961 = pneg %p144
      $region42: #{segmentation_model_output_wrapper.1} parent=39 // pred_check_branch
        %963 = sbr.rel (%p961) target = $region44
      $region43: #{segmentation_model_output_wrapper.1} parent=39 // pred_region
        _
      $region44: #{segmentation_model_output_wrapper.1} parent=39 // pred_fallthru
        _
    $region40: #{segmentation_model_output_wrapper.1} parent=5 // pred_fallthru
      _
    %p964 = scmp.le.s32.totalorder 2, %s11
    // Predicated region
    $region45: #{segmentation_model_output_wrapper.1} parent=5 // pred_check
      %p965 = pneg %p964
    $region46: #{segmentation_model_output_wrapper.1} parent=5 // pred_check_branch
      %967 = sbr.rel (%p965) target = $region48
    $region47: #{segmentation_model_output_wrapper.1} parent=5 // pred_region
      %s968 = ssub.s32 %s11, 2
      // Predicated region
      $region49: #{segmentation_model_output_wrapper.1} parent=47 // pred_check
        %p969 = pneg %p150
      $region50: #{segmentation_model_output_wrapper.1} parent=47 // pred_check_branch
        %971 = sbr.rel (%p969) target = $region52
      $region51: #{segmentation_model_output_wrapper.1} parent=47 // pred_region
        %p972 = scmp.lt.s32.totalorder %s17, 1
        %s973 = scalar_select %p972, %s17, 1
        %s974 = smul.addr %s973, 2
        %s975 = smul.addr %s974, 4
        %s976 = scalar_lea.vmem %s5, %s975
      $region52: #{segmentation_model_output_wrapper.1} parent=47 // pred_fallthru
        _
    $region48: #{segmentation_model_output_wrapper.1} parent=5 // pred_fallthru
      _
  $region6: #{segmentation_model_output_wrapper.1} parent=0 // loop_footer
    %s15 = sadd.s32 1, %s11
  $region7: #{segmentation_model_output_wrapper.1} parent=0 // loop_footer_branch
    %10 = sbr.rel target = $region3
  $region8: #{segmentation_model_output_wrapper.1} parent=0 // loop_exit
    _

</llo_original>
